<compile_context>
chip_gen: v7x
topology: tpu7x:2x2x1
jax: 0.10.0
libtpu: 0.0.40
codegen_flags: <defaults>
</compile_context>

<pallas_src>
import jax
import jax.numpy as jnp
from jax.experimental import pallas as pl
from jax.experimental.pallas import tpu as pltpu

IN_FEATS = 2
HID = 70
OUT = 2

LANES = 128          # lane width: pad 70 -> 128 and 2 -> 128
TILE_B = 128         # batch rows per grid step (multiple of 8; fills MXU M dim)

# Packed parameter layout (rows x 128 lanes, f32); all segment starts 8-aligned:
#   [  0:  8)  W1  (rows 0..1 real, cols 0..69 real)          (2   -> 128)
#   [  8:136)  W2  (real block [0:70, 0:70])                  (128 x 128)
#   [136:264)  W3  (real block [0:70, 0:2])                   (128 x 128)
#   [264:272)  b1  (row 264, cols 0..69 real)
#   [272:280)  b2  (row 272, cols 0..69 real)
#   [280:288)  b3  (row 280, cols 0..1  real)
P_ROWS = 288


def mlp_kernel(x_ref, p_ref, o_ref):
    x = x_ref[...]                               # (TILE_B, 2) f32

    w1_r0 = p_ref[0:1, :]                        # (1, 128)
    w1_r1 = p_ref[1:2, :]                        # (1, 128)
    b1 = p_ref[264:265, :]                       # (1, 128)
    b2 = p_ref[272:273, :]
    b3 = p_ref[280:281, :]

    # --- Layer 1 (K=2): two VPU broadcast FMAs, skip the degenerate MXU matmul.
    h1 = x[:, 0:1] * w1_r0 + x[:, 1:2] * w1_r1 + b1      # (TILE_B, 128)
    h1 = jnp.maximum(h1, 0.0)                             # ReLU (padding stays 0)

    # --- Layer 2: dense 128x128 MXU matmul (zero-padded beyond 70).
    h2 = jnp.dot(h1, p_ref[8:136, :], preferred_element_type=jnp.float32) + b2
    h2 = jnp.maximum(h2, 0.0)

    # --- Layer 3: lane-dense (TILE_B, 128) output; real outputs in lanes 0..1.
    o_ref[...] = jnp.dot(h2, p_ref[136:264, :],
                         preferred_element_type=jnp.float32) + b3


def _pallas_mlp(x_pad, packed):
    b_pad = x_pad.shape[0]
    grid = (b_pad // TILE_B,)
    return pl.pallas_call(
        mlp_kernel,
        out_shape=jax.ShapeDtypeStruct((b_pad, LANES), jnp.float32),
        grid_spec=pltpu.PrefetchScalarGridSpec(
            num_scalar_prefetch=0,
            grid=grid,
            in_specs=[
                pl.BlockSpec((TILE_B, IN_FEATS), lambda i: (i, 0)),
                # constant index_map -> packed params DMA'd once, kept resident
                pl.BlockSpec((P_ROWS, LANES), lambda i: (0, 0)),
            ],
            out_specs=pl.BlockSpec((TILE_B, LANES), lambda i: (i, 0)),
        ),
        compiler_params=pltpu.CompilerParams(
            dimension_semantics=("parallel",)),
    )(x_pad, packed)


@jax.jit
def mlp_forward_batched(x, packed):
    """x: (B, 2) float32 -> (B, 2) float32 (batched MLP forward)."""
    B = x.shape[0]
    b_pad = ((B + TILE_B - 1) // TILE_B) * TILE_B
    x_pad = jnp.zeros((b_pad, IN_FEATS), jnp.float32).at[:B].set(
        x.astype(jnp.float32))
    out = _pallas_mlp(x_pad, packed)
    return out[:B, :OUT]


def mlp_forward(x, packed):
    """Matches NN.forward semantics: flat 2-element input -> (2,) output."""
    y = mlp_forward_batched(jnp.asarray(x, jnp.float32).reshape(1, IN_FEATS),
                            packed)
    return y.reshape(OUT)


def init_params(key):
    """PyTorch nn.Linear-style init: U(-1/sqrt(fan_in), 1/sqrt(fan_in)) for
    weight and bias. Weights stored as (in_features, out_features)."""
    dims = [(IN_FEATS, HID), (HID, HID), (HID, OUT)]
    params = []
    for fan_in, fan_out in dims:
        key, kw, kb = jax.random.split(key, 3)
        bound = 1.0 / jnp.sqrt(float(fan_in))
        w = jax.random.uniform(kw, (fan_in, fan_out), jnp.float32, -bound, bound)
        b = jax.random.uniform(kb, (fan_out,), jnp.float32, -bound, bound)
        params.extend([w, b])
    return tuple(params)


def pack_params(params):
    """Zero-pad to 128 lanes and pack all weights/biases into one f32 buffer."""
    w1, b1, w2, b2, w3, b3 = params
    p = jnp.zeros((P_ROWS, LANES), jnp.float32)
    p = p.at[0:IN_FEATS, :HID].set(w1)          # (2, 70)
    p = p.at[8:8 + HID, :HID].set(w2)           # (70, 70)
    p = p.at[136:136 + HID, :OUT].set(w3)       # (70, 2)
    p = p.at[264, :HID].set(b1)
    p = p.at[272, :HID].set(b2)
    p = p.at[280, :OUT].set(b3)
    return p


def _reference(x2d, params):
    w1, b1, w2, b2, w3, b3 = params
    h = jnp.maximum(x2d @ w1 + b1, 0.0)
    h = jnp.maximum(h @ w2 + b2, 0.0)
    return h @ w3 + b3


if __name__ == "__main__":
    key = jax.random.PRNGKey(0)
    key, kx, kxb = jax.random.split(key, 3)

    params = init_params(key)
    packed = pack_params(params)

    # 1) Single-sample path (exact semantics of the PyTorch module: (2,) -> (2,)).
    x = jax.random.normal(kx, (IN_FEATS,), jnp.float32)
    y = mlp_forward(x, packed)
    jax.block_until_ready(y)
    y_ref = _reference(x.reshape(1, IN_FEATS), params).reshape(OUT)
    assert y.shape == (OUT,)
    assert jnp.allclose(y, y_ref, atol=1e-5, rtol=1e-4)

    # 2) Batched path (the throughput-oriented kernel): (256, 2) -> (256, 2).
    xb = jax.random.normal(kxb, (256, IN_FEATS), jnp.float32)
    yb = mlp_forward_batched(xb, packed)
    jax.block_until_ready(yb)
    yb_ref = _reference(xb, params)
    assert yb.shape == (256, OUT)
    assert jnp.allclose(yb, yb_ref, atol=1e-5, rtol=1e-4)

    print("KERNEL_OK")
</pallas_src>

<mosaic_0001>
module attributes {stable_mosaic.version = 11 : i64} {
  func.func @mlp_kernel(%arg0: i32, %arg1: memref<128x2xf32, #tpu.memory_space<vmem>>, %arg2: memref<288x128xf32, #tpu.memory_space<vmem>>, %arg3: memref<128x128xf32, #tpu.memory_space<vmem>>) attributes {dimension_semantics = [#tpu.dimension_semantics<parallel>], iteration_bounds = array<i64: 1>, scalar_prefetch = 0 : i64, scratch_operands = 0 : i64, tpu.core_type = #tpu.core_type<tc>, window_params = [{transform_indices = @transform_0, window_bounds = array<i64: 128, 2>}, {pipeline_mode = #tpu.pipeline_mode<synchronous>, transform_indices = @transform_1, window_bounds = array<i64: 288, 128>}, {transform_indices = @transform_2, window_bounds = array<i64: 128, 128>}]} {
    %c0 = arith.constant 0 : index
    %c0_0 = arith.constant 0 : index
    %0 = vector.load %arg1[%c0, %c0_0] : memref<128x2xf32, #tpu.memory_space<vmem>>, vector<128x2xf32>
    %c0_1 = arith.constant 0 : index
    %c0_2 = arith.constant 0 : index
    %1 = vector.load %arg2[%c0_1, %c0_2] : memref<288x128xf32, #tpu.memory_space<vmem>>, vector<1x128xf32>
    %c1 = arith.constant 1 : index
    %c0_3 = arith.constant 0 : index
    %2 = vector.load %arg2[%c1, %c0_3] : memref<288x128xf32, #tpu.memory_space<vmem>>, vector<1x128xf32>
    %c264 = arith.constant 264 : index
    %c0_4 = arith.constant 0 : index
    %3 = vector.load %arg2[%c264, %c0_4] : memref<288x128xf32, #tpu.memory_space<vmem>>, vector<1x128xf32>
    %c272 = arith.constant 272 : index
    %c0_5 = arith.constant 0 : index
    %4 = vector.load %arg2[%c272, %c0_5] : memref<288x128xf32, #tpu.memory_space<vmem>>, vector<1x128xf32>
    %c280 = arith.constant 280 : index
    %c0_6 = arith.constant 0 : index
    %5 = vector.load %arg2[%c280, %c0_6] : memref<288x128xf32, #tpu.memory_space<vmem>>, vector<1x128xf32>
    %6 = vector.extract_strided_slice %0 {offsets = [0, 0], sizes = [128, 1], strides = [1, 1]} : vector<128x2xf32> to vector<128x1xf32>
    %7 = vector.broadcast %6 : vector<128x1xf32> to vector<128x128xf32>
    %8 = vector.broadcast %1 : vector<1x128xf32> to vector<128x128xf32>
    %9 = arith.mulf %7, %8 : vector<128x128xf32>
    %10 = vector.extract_strided_slice %0 {offsets = [0, 1], sizes = [128, 1], strides = [1, 1]} : vector<128x2xf32> to vector<128x1xf32>
    %11 = vector.broadcast %10 : vector<128x1xf32> to vector<128x128xf32>
    %12 = vector.broadcast %2 : vector<1x128xf32> to vector<128x128xf32>
    %13 = arith.mulf %11, %12 : vector<128x128xf32>
    %14 = arith.addf %9, %13 : vector<128x128xf32>
    %15 = vector.broadcast %3 : vector<1x128xf32> to vector<128x128xf32>
    %16 = arith.addf %14, %15 : vector<128x128xf32>
    %cst = arith.constant 0.000000e+00 : f32
    %17 = vector.broadcast %cst : f32 to vector<128x128xf32>
    %18 = arith.maximumf %16, %17 : vector<128x128xf32>
    %c8 = arith.constant 8 : index
    %c0_7 = arith.constant 0 : index
    %19 = vector.load %arg2[%c8, %c0_7] : memref<288x128xf32, #tpu.memory_space<vmem>>, vector<128x128xf32>
    %cst_8 = arith.constant dense<0.000000e+00> : vector<128x128xf32>
    %20 = tpu.matmul %18, %19, %cst_8 {dimension_numbers = #tpu.dot_dimension_numbers<[1], [0], [0], [1], [0, 0, 1, 1], [], []>} : vector<128x128xf32>, vector<128x128xf32>, vector<128x128xf32> -> vector<128x128xf32>
    %21 = vector.broadcast %4 : vector<1x128xf32> to vector<128x128xf32>
    %22 = arith.addf %20, %21 : vector<128x128xf32>
    %cst_9 = arith.constant 0.000000e+00 : f32
    %23 = vector.broadcast %cst_9 : f32 to vector<128x128xf32>
    %24 = arith.maximumf %22, %23 : vector<128x128xf32>
    %c136 = arith.constant 136 : index
    %c0_10 = arith.constant 0 : index
    %25 = vector.load %arg2[%c136, %c0_10] : memref<288x128xf32, #tpu.memory_space<vmem>>, vector<128x128xf32>
    %cst_11 = arith.constant dense<0.000000e+00> : vector<128x128xf32>
    %26 = tpu.matmul %24, %25, %cst_11 {dimension_numbers = #tpu.dot_dimension_numbers<[1], [0], [0], [1], [0, 0, 1, 1], [], []>} : vector<128x128xf32>, vector<128x128xf32>, vector<128x128xf32> -> vector<128x128xf32>
    %27 = vector.broadcast %5 : vector<1x128xf32> to vector<128x128xf32>
    %28 = arith.addf %26, %27 : vector<128x128xf32>
    %c0_12 = arith.constant 0 : index
    %c0_13 = arith.constant 0 : index
    %29 = vector.load %arg3[%c0_12, %c0_13] : memref<128x128xf32, #tpu.memory_space<vmem>>, vector<128x128xf32>
    tpu.vector_store %arg3[%c0_12, %c0_13], %28 {strides = array<i32>} : memref<128x128xf32, #tpu.memory_space<vmem>>, vector<128x128xf32>,
    return
  }
  func.func @transform_0(%arg0: i32) -> (i32, i32) {
    %c0_i32 = arith.constant 0 : i32
    %c0_i32_0 = arith.constant 0 : i32
    return %arg0, %c0_i32 : i32, i32
  }
  func.func @transform_1(%arg0: i32) -> (i32, i32) {
    %c0_i32 = arith.constant 0 : i32
    %c0_i32_0 = arith.constant 0 : i32
    %c0_i32_1 = arith.constant 0 : i32
    return %c0_i32, %c0_i32_0 : i32, i32
  }
  func.func @transform_2(%arg0: i32) -> (i32, i32) {
    %c0_i32 = arith.constant 0 : i32
    %c0_i32_0 = arith.constant 0 : i32
    return %arg0, %c0_i32 : i32, i32
  }
}

</mosaic_0001>

<llo_original>
// kernel: mlp_forward_batched.1
$region0: #{mlp_forward_batched.1}
  #allocation0 [shape = 'u32[]', space=smem, size = 0x4, offset = 0x4, fixed_abs, tag = 'smem constant byte address 0x4 - core index']
  #allocation1 [shape = 'u32[144,128]{1,0:T(1,128)}', space=vmem, size = 0x12000, scoped, tag = 'internal scratch']
  %s0 = inlined_call_operand.vmem [shape: f32[128,2], index: 0, kind: input, shape index: {}]
  %s1 = inlined_call_operand.hbm [shape: f32[288,128], index: 1, kind: input, shape index: {}]
  %s2 = inlined_call_operand.vmem [shape: f32[128,128], index: 2, kind: output, shape index: {}]
  %s3 = sld [smem:[#allocation0]]
  $region22: #{mlp_forward_batched.1} parent=0
    _
  %s5 = ssub.s32 1, %s3
  %s6 = scalar_select 0, %s5, %s3
  $region1: #{mlp_forward_batched.1} parent=0
    #allocation2 [shape = 'u8[147456]{0}', space=vmem, size = 0x24000, scoped, tag = 'input window, operand 1, single buffered']
    #allocation3 [shape = 's32[1]{0}', space=sflag, size = 0x4, scoped, tag = 'scoped memory for mlp_forward_batched.1']
    %7 = vsyncpa [#allocation3], 0
    // Predicated region
    $region2: #{mlp_forward_batched.1} parent=1 // pred_check
      _
    $region3: #{mlp_forward_batched.1} parent=1 // pred_check_branch
      %9 = sbr.rel (0) target = $region5
    $region4: #{mlp_forward_batched.1} parent=1 // pred_region
      _
    $region5: #{mlp_forward_batched.1} parent=1 // pred_fallthru
      _
    // Predicated region
    $region6: #{mlp_forward_batched.1} parent=1 // pred_check
      _
    $region7: #{mlp_forward_batched.1} parent=1 // pred_check_branch
      %11 = sbr.rel (0) target = $region9
    $region8: #{mlp_forward_batched.1} parent=1 // pred_region
      %s13 = ssub.s32 4608, 4608
      %14 = vsyncadd [#allocation3], %s13
      %s15 = sshll.u32 [#allocation2], 4
      %s16 = int_to_ptr.vmem [resolvable:$true] %s15
      %21 = dma.hbm_to_vmem [thread:$0]  %s1, 4608, %s16, [#allocation3], 128, 128, 8
    $region9: #{mlp_forward_batched.1} parent=1 // pred_fallthru
      _
    // Predicated region
    $region10: #{mlp_forward_batched.1} parent=1 // pred_check
      _
    $region11: #{mlp_forward_batched.1} parent=1 // pred_check_branch
      %23 = sbr.rel (0) target = $region13
    $region12: #{mlp_forward_batched.1} parent=1 // pred_region
      %24 = dma.done [#allocation3], 4608
    $region13: #{mlp_forward_batched.1} parent=1 // pred_fallthru
      _
    %v25 = vld [vmem:[%s0] sm:$0xff]
    %v26 = vld [vmem:[%s0 + $0x8] sm:$0xff]
    %v27 = vld [vmem:[%s0 + $0x10] sm:$0xff]
    %v28 = vld [vmem:[%s0 + $0x18] sm:$0xff]
    %v29 = vld [vmem:[%s0 + $0x20] sm:$0xff]
    %v30 = vld [vmem:[%s0 + $0x28] sm:$0xff]
    %v31 = vld [vmem:[%s0 + $0x30] sm:$0xff]
    %v32 = vld [vmem:[%s0 + $0x38] sm:$0xff]
    %v33 = vld [vmem:[%s0 + $0x40] sm:$0xff]
    %v34 = vld [vmem:[%s0 + $0x48] sm:$0xff]
    %v35 = vld [vmem:[%s0 + $0x50] sm:$0xff]
    %v36 = vld [vmem:[%s0 + $0x58] sm:$0xff]
    %v37 = vld [vmem:[%s0 + $0x60] sm:$0xff]
    %v38 = vld [vmem:[%s0 + $0x68] sm:$0xff]
    %v39 = vld [vmem:[%s0 + $0x70] sm:$0xff]
    %v40 = vld [vmem:[%s0 + $0x78] sm:$0xff]
    %v41 = vld [vmem:[#allocation2] sm:$0x1]
    %v42 = vld [vmem:[#allocation2 + $0x1] sm:$0x1]
    %v43 = vld [vmem:[#allocation2 + $0x108] sm:$0x1]
    %v44 = vld [vmem:[#allocation2 + $0x110] sm:$0x1]
    %v45 = vld [vmem:[#allocation2 + $0x118] sm:$0x1]
    %47 = vset.pattern.permute.xlu0 0
    %48 = vperm.xlu0 %47, %v25
    %v49 = vpop.permute.xlu0 %48
    %52 = vset.pattern.permute.xlu0 0
    %53 = vperm.xlu0 %52, %v26
    %v54 = vpop.permute.xlu0 %53
    %57 = vset.pattern.permute.xlu0 0
    %58 = vperm.xlu0 %57, %v27
    %v59 = vpop.permute.xlu0 %58
    %62 = vset.pattern.permute.xlu0 0
    %63 = vperm.xlu0 %62, %v28
    %v64 = vpop.permute.xlu0 %63
    %67 = vset.pattern.permute.xlu0 0
    %68 = vperm.xlu0 %67, %v29
    %v69 = vpop.permute.xlu0 %68
    %72 = vset.pattern.permute.xlu0 0
    %73 = vperm.xlu0 %72, %v30
    %v74 = vpop.permute.xlu0 %73
    %77 = vset.pattern.permute.xlu0 0
    %78 = vperm.xlu0 %77, %v31
    %v79 = vpop.permute.xlu0 %78
    %82 = vset.pattern.permute.xlu0 0
    %83 = vperm.xlu0 %82, %v32
    %v84 = vpop.permute.xlu0 %83
    %87 = vset.pattern.permute.xlu0 0
    %88 = vperm.xlu0 %87, %v33
    %v89 = vpop.permute.xlu0 %88
    %92 = vset.pattern.permute.xlu0 0
    %93 = vperm.xlu0 %92, %v34
    %v94 = vpop.permute.xlu0 %93
    %97 = vset.pattern.permute.xlu0 0
    %98 = vperm.xlu0 %97, %v35
    %v99 = vpop.permute.xlu0 %98
    %102 = vset.pattern.permute.xlu0 0
    %103 = vperm.xlu0 %102, %v36
    %v104 = vpop.permute.xlu0 %103
    %107 = vset.pattern.permute.xlu0 0
    %108 = vperm.xlu0 %107, %v37
    %v109 = vpop.permute.xlu0 %108
    %112 = vset.pattern.permute.xlu0 0
    %113 = vperm.xlu0 %112, %v38
    %v114 = vpop.permute.xlu0 %113
    %117 = vset.pattern.permute.xlu0 0
    %118 = vperm.xlu0 %117, %v39
    %v119 = vpop.permute.xlu0 %118
    %122 = vset.pattern.permute.xlu0 0
    %123 = vperm.xlu0 %122, %v40
    %v124 = vpop.permute.xlu0 %123
    %v126 = vlaneseq
    %v127 = vshrl.u32 %v126, 7
    %v128 = vsub.s32 0, %v127
    %v129 = vrot.slane %v41, %v128
    %v130 = vmul.f32 %v49, %v129
    %v131 = vmul.f32 %v54, %v129
    %v132 = vmul.f32 %v59, %v129
    %v133 = vmul.f32 %v64, %v129
    %v134 = vmul.f32 %v69, %v129
    %v135 = vmul.f32 %v74, %v129
    %v136 = vmul.f32 %v79, %v129
    %v137 = vmul.f32 %v84, %v129
    %v138 = vmul.f32 %v89, %v129
    %v139 = vmul.f32 %v94, %v129
    %v140 = vmul.f32 %v99, %v129
    %v141 = vmul.f32 %v104, %v129
    %v142 = vmul.f32 %v109, %v129
    %v143 = vmul.f32 %v114, %v129
    %v144 = vmul.f32 %v119, %v129
    %v145 = vmul.f32 %v124, %v129
    %146 = vset.pattern.permute.xlu0 1
    %147 = vperm.xlu0 %146, %v25
    %v148 = vpop.permute.xlu0 %147
    %150 = vset.pattern.permute.xlu0 1
    %151 = vperm.xlu0 %150, %v26
    %v152 = vpop.permute.xlu0 %151
    %154 = vset.pattern.permute.xlu0 1
    %155 = vperm.xlu0 %154, %v27
    %v156 = vpop.permute.xlu0 %155
    %158 = vset.pattern.permute.xlu0 1
    %159 = vperm.xlu0 %158, %v28
    %v160 = vpop.permute.xlu0 %159
    %162 = vset.pattern.permute.xlu0 1
    %163 = vperm.xlu0 %162, %v29
    %v164 = vpop.permute.xlu0 %163
    %166 = vset.pattern.permute.xlu0 1
    %167 = vperm.xlu0 %166, %v30
    %v168 = vpop.permute.xlu0 %167
    %170 = vset.pattern.permute.xlu0 1
    %171 = vperm.xlu0 %170, %v31
    %v172 = vpop.permute.xlu0 %171
    %174 = vset.pattern.permute.xlu0 1
    %175 = vperm.xlu0 %174, %v32
    %v176 = vpop.permute.xlu0 %175
    %178 = vset.pattern.permute.xlu0 1
    %179 = vperm.xlu0 %178, %v33
    %v180 = vpop.permute.xlu0 %179
    %182 = vset.pattern.permute.xlu0 1
    %183 = vperm.xlu0 %182, %v34
    %v184 = vpop.permute.xlu0 %183
    %186 = vset.pattern.permute.xlu0 1
    %187 = vperm.xlu0 %186, %v35
    %v188 = vpop.permute.xlu0 %187
    %190 = vset.pattern.permute.xlu0 1
    %191 = vperm.xlu0 %190, %v36
    %v192 = vpop.permute.xlu0 %191
    %194 = vset.pattern.permute.xlu0 1
    %195 = vperm.xlu0 %194, %v37
    %v196 = vpop.permute.xlu0 %195
    %198 = vset.pattern.permute.xlu0 1
    %199 = vperm.xlu0 %198, %v38
    %v200 = vpop.permute.xlu0 %199
    %202 = vset.pattern.permute.xlu0 1
    %203 = vperm.xlu0 %202, %v39
    %v204 = vpop.permute.xlu0 %203
    %206 = vset.pattern.permute.xlu0 1
    %207 = vperm.xlu0 %206, %v40
    %v208 = vpop.permute.xlu0 %207
    %v210 = vlaneseq
    %v211 = vshrl.u32 %v210, 7
    %v212 = vsub.s32 0, %v211
    %v213 = vrot.slane %v42, %v212
    %v214 = vmul.f32 %v148, %v213
    %v215 = vmul.f32 %v152, %v213
    %v216 = vmul.f32 %v156, %v213
    %v217 = vmul.f32 %v160, %v213
    %v218 = vmul.f32 %v164, %v213
    %v219 = vmul.f32 %v168, %v213
    %v220 = vmul.f32 %v172, %v213
    %v221 = vmul.f32 %v176, %v213
    %v222 = vmul.f32 %v180, %v213
    %v223 = vmul.f32 %v184, %v213
    %v224 = vmul.f32 %v188, %v213
    %v225 = vmul.f32 %v192, %v213
    %v226 = vmul.f32 %v196, %v213
    %v227 = vmul.f32 %v200, %v213
    %v228 = vmul.f32 %v204, %v213
    %v229 = vmul.f32 %v208, %v213
    %v230 = vadd.f32 %v130, %v214
    %v231 = vadd.f32 %v131, %v215
    %v232 = vadd.f32 %v132, %v216
    %v233 = vadd.f32 %v133, %v217
    %v234 = vadd.f32 %v134, %v218
    %v235 = vadd.f32 %v135, %v219
    %v236 = vadd.f32 %v136, %v220
    %v237 = vadd.f32 %v137, %v221
    %v238 = vadd.f32 %v138, %v222
    %v239 = vadd.f32 %v139, %v223
    %v240 = vadd.f32 %v140, %v224
    %v241 = vadd.f32 %v141, %v225
    %v242 = vadd.f32 %v142, %v226
    %v243 = vadd.f32 %v143, %v227
    %v244 = vadd.f32 %v144, %v228
    %v245 = vadd.f32 %v145, %v229
    %v246 = vlaneseq
    %v247 = vshrl.u32 %v246, 7
    %v248 = vsub.s32 0, %v247
    %v249 = vrot.slane %v43, %v248
    %v250 = vadd.f32 %v230, %v249
    %v251 = vadd.f32 %v231, %v249
    %v252 = vadd.f32 %v232, %v249
    %v253 = vadd.f32 %v233, %v249
    %v254 = vadd.f32 %v234, %v249
    %v255 = vadd.f32 %v235, %v249
    %v256 = vadd.f32 %v236, %v249
    %v257 = vadd.f32 %v237, %v249
    %v258 = vadd.f32 %v238, %v249
    %v259 = vadd.f32 %v239, %v249
    %v260 = vadd.f32 %v240, %v249
    %v261 = vadd.f32 %v241, %v249
    %v262 = vadd.f32 %v242, %v249
    %v263 = vadd.f32 %v243, %v249
    %v264 = vadd.f32 %v244, %v249
    %v265 = vadd.f32 %v245, %v249
    %v266 = vmax.f32 %v250, 0.0
    %v267 = vmax.f32 %v251, 0.0
    %v268 = vmax.f32 %v252, 0.0
    %v269 = vmax.f32 %v253, 0.0
    %v270 = vmax.f32 %v254, 0.0
    %v271 = vmax.f32 %v255, 0.0
    %v272 = vmax.f32 %v256, 0.0
    %v273 = vmax.f32 %v257, 0.0
    %v274 = vmax.f32 %v258, 0.0
    %v275 = vmax.f32 %v259, 0.0
    %v276 = vmax.f32 %v260, 0.0
    %v277 = vmax.f32 %v261, 0.0
    %v278 = vmax.f32 %v262, 0.0
    %v279 = vmax.f32 %v263, 0.0
    %v280 = vmax.f32 %v264, 0.0
    %v281 = vmax.f32 %v265, 0.0
    %v282 = vld [vmem:[#allocation2 + $0x8] sm:$0xff]
    %v283 = vld [vmem:[#allocation2 + $0x10] sm:$0xff]
    %v284 = vld [vmem:[#allocation2 + $0x18] sm:$0xff]
    %v285 = vld [vmem:[#allocation2 + $0x20] sm:$0xff]
    %v286 = vld [vmem:[#allocation2 + $0x28] sm:$0xff]
    %v287 = vld [vmem:[#allocation2 + $0x30] sm:$0xff]
    %v288 = vld [vmem:[#allocation2 + $0x38] sm:$0xff]
    %v289 = vld [vmem:[#allocation2 + $0x40] sm:$0xff]
    %v290 = vld [vmem:[#allocation2 + $0x48] sm:$0xff]
    %v291 = vld [vmem:[#allocation2 + $0x50] sm:$0xff]
    %v292 = vld [vmem:[#allocation2 + $0x58] sm:$0xff]
    %v293 = vld [vmem:[#allocation2 + $0x60] sm:$0xff]
    %v294 = vld [vmem:[#allocation2 + $0x68] sm:$0xff]
    %v295 = vld [vmem:[#allocation2 + $0x70] sm:$0xff]
    %v296 = vld [vmem:[#allocation2 + $0x78] sm:$0xff]
    %v297 = vld [vmem:[#allocation2 + $0x80] sm:$0xff]
    %v298 = vlaneseq
    %v299 = vshrl.u32 %v298, 7
    %v300 = vsub.s32 0, %v299
    %v301 = vrot.slane %v44, %v300
    %302 = vmatprep.subr.mxu0 0.0
    %303 = vmatpush1.msra.mxu0 %v282
    %304 = vmatprep.subr.mxu0 0.0
    %305 = vmatpush1.msra.mxu0 %v283
    %306 = vmatprep.subr.mxu0 0.0
    %307 = vmatpush1.msra.mxu0 %v284
    %308 = vmatprep.subr.mxu0 0.0
    %309 = vmatpush1.msra.mxu0 %v285
    %310 = vmatprep.subr.mxu0 0.0
    %311 = vmatpush1.msra.mxu0 %v286
    %312 = vmatprep.subr.mxu0 0.0
    %313 = vmatpush1.msra.mxu0 %v287
    %314 = vmatprep.subr.mxu0 0.0
    %315 = vmatpush1.msra.mxu0 %v288
    %316 = vmatprep.subr.mxu0 0.0
    %317 = vmatpush1.msra.mxu0 %v289
    %318 = vmatprep.subr.mxu0 0.0
    %319 = vmatpush1.msra.mxu0 %v290
    %320 = vmatprep.subr.mxu0 0.0
    %321 = vmatpush1.msra.mxu0 %v291
    %322 = vmatprep.subr.mxu0 0.0
    %323 = vmatpush1.msra.mxu0 %v292
    %324 = vmatprep.subr.mxu0 0.0
    %325 = vmatpush1.msra.mxu0 %v293
    %326 = vmatprep.subr.mxu0 0.0
    %327 = vmatpush1.msra.mxu0 %v294
    %328 = vmatprep.subr.mxu0 0.0
    %329 = vmatpush1.msra.mxu0 %v295
    %330 = vmatprep.subr.mxu0 0.0
    %331 = vmatpush1.msra.mxu0 %v296
    %332 = vmatprep.subr.mxu0 0.0
    %333 = vmatpush1.msra.mxu0 %v297
    %334 = vmatprep.subr.mxu0 0.0
    %335 = vmatpush1.msra.mxu0 0.0
    %336 = vmatprep.subr.mxu0 0.0
    %337 = vmatpush1.msra.mxu0 0.0
    %338 = vmatprep.subr.mxu0 0.0
    %339 = vmatpush1.msra.mxu0 0.0
    %340 = vmatprep.subr.mxu0 0.0
    %341 = vmatpush1.msra.mxu0 0.0
    %342 = vmatprep.subr.mxu0 0.0
    %343 = vmatpush1.msra.mxu0 0.0
    %344 = vmatprep.subr.mxu0 0.0
    %345 = vmatpush1.msra.mxu0 0.0
    %346 = vmatprep.subr.mxu0 0.0
    %347 = vmatpush1.msra.mxu0 0.0
    %348 = vmatprep.subr.mxu0 0.0
    %349 = vmatpush1.msra.mxu0 0.0
    %350 = vmatprep.subr.mxu0 0.0
    %351 = vmatpush1.msra.mxu0 0.0
    %352 = vmatprep.subr.mxu0 0.0
    %353 = vmatpush1.msra.mxu0 0.0
    %354 = vmatprep.subr.mxu0 0.0
    %355 = vmatpush1.msra.mxu0 0.0
    %356 = vmatprep.subr.mxu0 0.0
    %357 = vmatpush1.msra.mxu0 0.0
    %358 = vmatprep.subr.mxu0 0.0
    %359 = vmatpush1.msra.mxu0 0.0
    %360 = vmatprep.subr.mxu0 0.0
    %361 = vmatpush1.msra.mxu0 0.0
    %362 = vmatprep.subr.mxu0 0.0
    %363 = vmatpush1.msra.mxu0 0.0
    %364 = vmatprep.subr.mxu0 0.0
    %365 = vmatpush1.msra.mxu0 0.0
    %366 = vmatprep.mubr.f32.mxu0 0.0
    %367 = vmatmul.mubr.f32.gmra.mrb[0].mxu0 %v266
    %v368 = vpop.f32.mrb[0].mxu0
    %v369 = vadd.f32 %v301, %v368
    %v370 = vpop.f32.mrb[0].mxu0
    %371 = vmatprep.mubr.f32.mxu0 0.0
    %372 = vmatmul.mubr.f32.gmra.mrb[0].mxu0 %v267
    %v373 = vpop.f32.mrb[0].mxu0
    %v374 = vadd.f32 %v301, %v373
    %v375 = vpop.f32.mrb[0].mxu0
    %376 = vmatprep.mubr.f32.mxu0 0.0
    %377 = vmatmul.mubr.f32.gmra.mrb[0].mxu0 %v268
    %v378 = vpop.f32.mrb[0].mxu0
    %v379 = vadd.f32 %v301, %v378
    %v380 = vpop.f32.mrb[0].mxu0
    %381 = vmatprep.mubr.f32.mxu0 0.0
    %382 = vmatmul.mubr.f32.gmra.mrb[0].mxu0 %v269
    %v383 = vpop.f32.mrb[0].mxu0
    %v384 = vadd.f32 %v301, %v383
    %v385 = vpop.f32.mrb[0].mxu0
    %386 = vmatprep.mubr.f32.mxu0 0.0
    %387 = vmatmul.mubr.f32.gmra.mrb[0].mxu0 %v270
    %v388 = vpop.f32.mrb[0].mxu0
    %v389 = vadd.f32 %v301, %v388
    %v390 = vpop.f32.mrb[0].mxu0
    %391 = vmatprep.mubr.f32.mxu0 0.0
    %392 = vmatmul.mubr.f32.gmra.mrb[0].mxu0 %v271
    %v393 = vpop.f32.mrb[0].mxu0
    %v394 = vadd.f32 %v301, %v393
    %v395 = vpop.f32.mrb[0].mxu0
    %396 = vmatprep.mubr.f32.mxu0 0.0
    %397 = vmatmul.mubr.f32.gmra.mrb[0].mxu0 %v272
    %v398 = vpop.f32.mrb[0].mxu0
    %v399 = vadd.f32 %v301, %v398
    %v400 = vpop.f32.mrb[0].mxu0
    %401 = vmatprep.mubr.f32.mxu0 0.0
    %402 = vmatmul.mubr.f32.gmra.mrb[0].mxu0 %v273
    %v403 = vpop.f32.mrb[0].mxu0
    %v404 = vadd.f32 %v301, %v403
    %v405 = vpop.f32.mrb[0].mxu0
    %406 = vmatprep.mubr.f32.mxu0 0.0
    %407 = vmatmul.mubr.f32.gmra.mrb[0].mxu0 %v274
    %v408 = vpop.f32.mrb[0].mxu0
    %v409 = vadd.f32 %v301, %v408
    %v410 = vpop.f32.mrb[0].mxu0
    %411 = vmatprep.mubr.f32.mxu0 0.0
    %412 = vmatmul.mubr.f32.gmra.mrb[0].mxu0 %v275
    %v413 = vpop.f32.mrb[0].mxu0
    %v414 = vadd.f32 %v301, %v413
    %v415 = vpop.f32.mrb[0].mxu0
    %416 = vmatprep.mubr.f32.mxu0 0.0
    %417 = vmatmul.mubr.f32.gmra.mrb[0].mxu0 %v276
    %v418 = vpop.f32.mrb[0].mxu0
    %v419 = vadd.f32 %v301, %v418
    %v420 = vpop.f32.mrb[0].mxu0
    %421 = vmatprep.mubr.f32.mxu0 0.0
    %422 = vmatmul.mubr.f32.gmra.mrb[0].mxu0 %v277
    %v423 = vpop.f32.mrb[0].mxu0
    %v424 = vadd.f32 %v301, %v423
    %v425 = vpop.f32.mrb[0].mxu0
    %426 = vmatprep.mubr.f32.mxu0 0.0
    %427 = vmatmul.mubr.f32.gmra.mrb[0].mxu0 %v278
    %v428 = vpop.f32.mrb[0].mxu0
    %v429 = vadd.f32 %v301, %v428
    %v430 = vpop.f32.mrb[0].mxu0
    %431 = vmatprep.mubr.f32.mxu0 0.0
    %432 = vmatmul.mubr.f32.gmra.mrb[0].mxu0 %v279
    %v433 = vpop.f32.mrb[0].mxu0
    %v434 = vadd.f32 %v301, %v433
    %v435 = vpop.f32.mrb[0].mxu0
    %436 = vmatprep.mubr.f32.mxu0 0.0
    %437 = vmatmul.mubr.f32.gmra.mrb[0].mxu0 %v280
    %v438 = vpop.f32.mrb[0].mxu0
    %v439 = vadd.f32 %v301, %v438
    %v440 = vpop.f32.mrb[0].mxu0
    %441 = vmatprep.mubr.f32.mxu0 0.0
    %442 = vmatmul.mubr.f32.gmra.mrb[0].mxu0 %v281
    %v443 = vpop.f32.mrb[0].mxu0
    %v444 = vadd.f32 %v301, %v443
    %v445 = vpop.f32.mrb[0].mxu0
    %446 = vdwg.mxu0
    %v447 = vmax.f32 %v369, 0.0
    %v448 = vmax.f32 %v374, 0.0
    %v449 = vmax.f32 %v379, 0.0
    %v450 = vmax.f32 %v384, 0.0
    %v451 = vmax.f32 %v389, 0.0
    %v452 = vmax.f32 %v394, 0.0
    %v453 = vmax.f32 %v399, 0.0
    %v454 = vmax.f32 %v404, 0.0
    %v455 = vmax.f32 %v409, 0.0
    %v456 = vmax.f32 %v414, 0.0
    %v457 = vmax.f32 %v419, 0.0
    %v458 = vmax.f32 %v424, 0.0
    %v459 = vmax.f32 %v429, 0.0
    %v460 = vmax.f32 %v434, 0.0
    %v461 = vmax.f32 %v439, 0.0
    %v462 = vmax.f32 %v444, 0.0
    %v463 = vld [vmem:[#allocation2 + $0x88] sm:$0xff]
    %v464 = vld [vmem:[#allocation2 + $0x90] sm:$0xff]
    %v465 = vld [vmem:[#allocation2 + $0x98] sm:$0xff]
    %v466 = vld [vmem:[#allocation2 + $0xa0] sm:$0xff]
    %v467 = vld [vmem:[#allocation2 + $0xa8] sm:$0xff]
    %v468 = vld [vmem:[#allocation2 + $0xb0] sm:$0xff]
    %v469 = vld [vmem:[#allocation2 + $0xb8] sm:$0xff]
    %v470 = vld [vmem:[#allocation2 + $0xc0] sm:$0xff]
    %v471 = vld [vmem:[#allocation2 + $0xc8] sm:$0xff]
    %v472 = vld [vmem:[#allocation2 + $0xd0] sm:$0xff]
    %v473 = vld [vmem:[#allocation2 + $0xd8] sm:$0xff]
    %v474 = vld [vmem:[#allocation2 + $0xe0] sm:$0xff]
    %v475 = vld [vmem:[#allocation2 + $0xe8] sm:$0xff]
    %v476 = vld [vmem:[#allocation2 + $0xf0] sm:$0xff]
    %v477 = vld [vmem:[#allocation2 + $0xf8] sm:$0xff]
    %v478 = vld [vmem:[#allocation2 + $0x100] sm:$0xff]
    %v479 = vlaneseq
    %v480 = vshrl.u32 %v479, 7
    %v481 = vsub.s32 0, %v480
    %v482 = vrot.slane %v45, %v481
    %483 = vmatprep.subr.mxu0 0.0
    %484 = vmatpush1.msra.mxu0 %v463
    %485 = vmatprep.subr.mxu0 0.0
    %486 = vmatpush1.msra.mxu0 %v464
    %487 = vmatprep.subr.mxu0 0.0
    %488 = vmatpush1.msra.mxu0 %v465
    %489 = vmatprep.subr.mxu0 0.0
    %490 = vmatpush1.msra.mxu0 %v466
    %491 = vmatprep.subr.mxu0 0.0
    %492 = vmatpush1.msra.mxu0 %v467
    %493 = vmatprep.subr.mxu0 0.0
    %494 = vmatpush1.msra.mxu0 %v468
    %495 = vmatprep.subr.mxu0 0.0
    %496 = vmatpush1.msra.mxu0 %v469
    %497 = vmatprep.subr.mxu0 0.0
    %498 = vmatpush1.msra.mxu0 %v470
    %499 = vmatprep.subr.mxu0 0.0
    %500 = vmatpush1.msra.mxu0 %v471
    %501 = vmatprep.subr.mxu0 0.0
    %502 = vmatpush1.msra.mxu0 %v472
    %503 = vmatprep.subr.mxu0 0.0
    %504 = vmatpush1.msra.mxu0 %v473
    %505 = vmatprep.subr.mxu0 0.0
    %506 = vmatpush1.msra.mxu0 %v474
    %507 = vmatprep.subr.mxu0 0.0
    %508 = vmatpush1.msra.mxu0 %v475
    %509 = vmatprep.subr.mxu0 0.0
    %510 = vmatpush1.msra.mxu0 %v476
    %511 = vmatprep.subr.mxu0 0.0
    %512 = vmatpush1.msra.mxu0 %v477
    %513 = vmatprep.subr.mxu0 0.0
    %514 = vmatpush1.msra.mxu0 %v478
    %515 = vmatprep.subr.mxu0 0.0
    %516 = vmatpush1.msra.mxu0 0.0
    %517 = vmatprep.subr.mxu0 0.0
    %518 = vmatpush1.msra.mxu0 0.0
    %519 = vmatprep.subr.mxu0 0.0
    %520 = vmatpush1.msra.mxu0 0.0
    %521 = vmatprep.subr.mxu0 0.0
    %522 = vmatpush1.msra.mxu0 0.0
    %523 = vmatprep.subr.mxu0 0.0
    %524 = vmatpush1.msra.mxu0 0.0
    %525 = vmatprep.subr.mxu0 0.0
    %526 = vmatpush1.msra.mxu0 0.0
    %527 = vmatprep.subr.mxu0 0.0
    %528 = vmatpush1.msra.mxu0 0.0
    %529 = vmatprep.subr.mxu0 0.0
    %530 = vmatpush1.msra.mxu0 0.0
    %531 = vmatprep.subr.mxu0 0.0
    %532 = vmatpush1.msra.mxu0 0.0
    %533 = vmatprep.subr.mxu0 0.0
    %534 = vmatpush1.msra.mxu0 0.0
    %535 = vmatprep.subr.mxu0 0.0
    %536 = vmatpush1.msra.mxu0 0.0
    %537 = vmatprep.subr.mxu0 0.0
    %538 = vmatpush1.msra.mxu0 0.0
    %539 = vmatprep.subr.mxu0 0.0
    %540 = vmatpush1.msra.mxu0 0.0
    %541 = vmatprep.subr.mxu0 0.0
    %542 = vmatpush1.msra.mxu0 0.0
    %543 = vmatprep.subr.mxu0 0.0
    %544 = vmatpush1.msra.mxu0 0.0
    %545 = vmatprep.subr.mxu0 0.0
    %546 = vmatpush1.msra.mxu0 0.0
    %547 = vmatprep.mubr.f32.mxu0 0.0
    %548 = vmatmul.mubr.f32.gmra.mrb[0].mxu0 %v447
    %v549 = vpop.f32.mrb[0].mxu0
    %v550 = vadd.f32 %v482, %v549
    %v551 = vpop.f32.mrb[0].mxu0
    %552 = vmatprep.mubr.f32.mxu0 0.0
    %553 = vmatmul.mubr.f32.gmra.mrb[0].mxu0 %v448
    %v554 = vpop.f32.mrb[0].mxu0
    %v555 = vadd.f32 %v482, %v554
    %v556 = vpop.f32.mrb[0].mxu0
    %557 = vmatprep.mubr.f32.mxu0 0.0
    %558 = vmatmul.mubr.f32.gmra.mrb[0].mxu0 %v449
    %v559 = vpop.f32.mrb[0].mxu0
    %v560 = vadd.f32 %v482, %v559
    %v561 = vpop.f32.mrb[0].mxu0
    %562 = vmatprep.mubr.f32.mxu0 0.0
    %563 = vmatmul.mubr.f32.gmra.mrb[0].mxu0 %v450
    %v564 = vpop.f32.mrb[0].mxu0
    %v565 = vadd.f32 %v482, %v564
    %v566 = vpop.f32.mrb[0].mxu0
    %567 = vmatprep.mubr.f32.mxu0 0.0
    %568 = vmatmul.mubr.f32.gmra.mrb[0].mxu0 %v451
    %v569 = vpop.f32.mrb[0].mxu0
    %v570 = vadd.f32 %v482, %v569
    %v571 = vpop.f32.mrb[0].mxu0
    %572 = vmatprep.mubr.f32.mxu0 0.0
    %573 = vmatmul.mubr.f32.gmra.mrb[0].mxu0 %v452
    %v574 = vpop.f32.mrb[0].mxu0
    %v575 = vadd.f32 %v482, %v574
    %v576 = vpop.f32.mrb[0].mxu0
    %577 = vmatprep.mubr.f32.mxu0 0.0
    %578 = vmatmul.mubr.f32.gmra.mrb[0].mxu0 %v453
    %v579 = vpop.f32.mrb[0].mxu0
    %v580 = vadd.f32 %v482, %v579
    %v581 = vpop.f32.mrb[0].mxu0
    %582 = vmatprep.mubr.f32.mxu0 0.0
    %583 = vmatmul.mubr.f32.gmra.mrb[0].mxu0 %v454
    %v584 = vpop.f32.mrb[0].mxu0
    %v585 = vadd.f32 %v482, %v584
    %v586 = vpop.f32.mrb[0].mxu0
    %587 = vmatprep.mubr.f32.mxu0 0.0
    %588 = vmatmul.mubr.f32.gmra.mrb[0].mxu0 %v455
    %v589 = vpop.f32.mrb[0].mxu0
    %v590 = vadd.f32 %v482, %v589
    %v591 = vpop.f32.mrb[0].mxu0
    %592 = vmatprep.mubr.f32.mxu0 0.0
    %593 = vmatmul.mubr.f32.gmra.mrb[0].mxu0 %v456
    %v594 = vpop.f32.mrb[0].mxu0
    %v595 = vadd.f32 %v482, %v594
    %v596 = vpop.f32.mrb[0].mxu0
    %597 = vmatprep.mubr.f32.mxu0 0.0
    %598 = vmatmul.mubr.f32.gmra.mrb[0].mxu0 %v457
    %v599 = vpop.f32.mrb[0].mxu0
    %v600 = vadd.f32 %v482, %v599
    %v601 = vpop.f32.mrb[0].mxu0
    %602 = vmatprep.mubr.f32.mxu0 0.0
    %603 = vmatmul.mubr.f32.gmra.mrb[0].mxu0 %v458
    %v604 = vpop.f32.mrb[0].mxu0
    %v605 = vadd.f32 %v482, %v604
    %v606 = vpop.f32.mrb[0].mxu0
    %607 = vmatprep.mubr.f32.mxu0 0.0
    %608 = vmatmul.mubr.f32.gmra.mrb[0].mxu0 %v459
    %v609 = vpop.f32.mrb[0].mxu0
    %v610 = vadd.f32 %v482, %v609
    %v611 = vpop.f32.mrb[0].mxu0
    %612 = vmatprep.mubr.f32.mxu0 0.0
    %613 = vmatmul.mubr.f32.gmra.mrb[0].mxu0 %v460
    %v614 = vpop.f32.mrb[0].mxu0
    %v615 = vadd.f32 %v482, %v614
    %v616 = vpop.f32.mrb[0].mxu0
    %617 = vmatprep.mubr.f32.mxu0 0.0
    %618 = vmatmul.mubr.f32.gmra.mrb[0].mxu0 %v461
    %v619 = vpop.f32.mrb[0].mxu0
    %v620 = vadd.f32 %v482, %v619
    %v621 = vpop.f32.mrb[0].mxu0
    %622 = vmatprep.mubr.f32.mxu0 0.0
    %623 = vmatmul.mubr.f32.gmra.mrb[0].mxu0 %v462
    %v624 = vpop.f32.mrb[0].mxu0
    %v625 = vadd.f32 %v482, %v624
    %v626 = vpop.f32.mrb[0].mxu0
    %627 = vdwg.mxu0
    %628 = vst [vmem:[%s2] sm:$0xff] %v550
    %629 = vst [vmem:[%s2 + $0x8] sm:$0xff] %v555
    %630 = vst [vmem:[%s2 + $0x10] sm:$0xff] %v560
    %631 = vst [vmem:[%s2 + $0x18] sm:$0xff] %v565
    %632 = vst [vmem:[%s2 + $0x20] sm:$0xff] %v570
    %633 = vst [vmem:[%s2 + $0x28] sm:$0xff] %v575
    %634 = vst [vmem:[%s2 + $0x30] sm:$0xff] %v580
    %635 = vst [vmem:[%s2 + $0x38] sm:$0xff] %v585
    %636 = vst [vmem:[%s2 + $0x40] sm:$0xff] %v590
    %637 = vst [vmem:[%s2 + $0x48] sm:$0xff] %v595
    %638 = vst [vmem:[%s2 + $0x50] sm:$0xff] %v600
    %639 = vst [vmem:[%s2 + $0x58] sm:$0xff] %v605
    %640 = vst [vmem:[%s2 + $0x60] sm:$0xff] %v610
    %641 = vst [vmem:[%s2 + $0x68] sm:$0xff] %v615
    %642 = vst [vmem:[%s2 + $0x70] sm:$0xff] %v620
    %643 = vst [vmem:[%s2 + $0x78] sm:$0xff] %v625
    // Predicated region
    $region14: #{mlp_forward_batched.1} parent=1 // pred_check
      _
    $region15: #{mlp_forward_batched.1} parent=1 // pred_check_branch
      %645 = sbr.rel (0) target = $region17
    $region16: #{mlp_forward_batched.1} parent=1 // pred_region
      _
    $region17: #{mlp_forward_batched.1} parent=1 // pred_fallthru
      _
    // Predicated region
    $region18: #{mlp_forward_batched.1} parent=1 // pred_check
      _
    $region19: #{mlp_forward_batched.1} parent=1 // pred_check_branch
      %647 = sbr.rel (0) target = $region21
    $region20: #{mlp_forward_batched.1} parent=1 // pred_region
      _
    $region21: #{mlp_forward_batched.1} parent=1 // pred_fallthru
      _
    %648 = vsyncpa [#allocation3], 1

</llo_original>
